<compile_context>
chip_gen: v7x
topology: tpu7x:2x2x1
jax: 0.10.0
libtpu: 0.0.40
codegen_flags: <defaults>
</compile_context>

<pallas_src>
import jax
import jax.numpy as jnp
from jax import lax
from jax.experimental import pallas as pl
from jax.experimental.pallas import tpu as pltpu

_MIB = 2 ** 20


def _physical_vmem_bytes():
    try:
        return int(pltpu.get_tpu_info().vmem_capacity_bytes)
    except Exception:
        return 64 * _MIB  # conservative (v7x)


def _vmem_limit(step_bytes):
    """Scoped-VMEM limit sized from the real per-step footprint, per generation."""
    phys = _physical_vmem_bytes()
    cap = int(phys * 0.6)  # leave headroom for Mosaic internal scratch
    want = max(32 * _MIB, int(2.5 * step_bytes) + 2 * _MIB)
    return int(min(cap, want))


def _choose_tile_n(n_tokens, per_lane_bytes, budget_bytes=12 * _MIB, max_tn=4096):
    """Largest token tile tn that divides N, is a multiple of 128 (or == N),
    and keeps the per-step VMEM footprint (per_lane_bytes * tn) under budget."""
    if n_tokens % 128 != 0 or n_tokens <= 128:
        return n_tokens
    cands = [t for t in range(128, min(n_tokens, max_tn) + 1, 128)
             if n_tokens % t == 0]
    if not cands:
        return n_tokens
    fitting = [t for t in cands if t * per_lane_bytes <= budget_bytes]
    return fitting[-1] if fitting else cands[0]


# ---------------------------------------------------------------------------
# Kernel 1: incremental Gram over N tiles -> Pearson corr -> per-channel mean
# ---------------------------------------------------------------------------
def _make_mean_similarity_kernel(batch, n_tokens, n_tiles, eps=1e-12):
    inv_b = 1.0 / float(batch)
    inv_n = 1.0 / float(n_tokens)

    def kernel(q_ref, out_ref, gram_ref, rsum_ref):
        n = pl.program_id(0)

        @pl.when(n == 0)
        def _():
            gram_ref[...] = jnp.zeros_like(gram_ref)
            rsum_ref[...] = jnp.zeros_like(rsum_ref)

        # q_ref is (B, C, tn): whole batch folded into one large DMA per step.
        s = jnp.sum(q_ref[...].astype(jnp.float32), axis=0) * inv_b      # [C, tn]
        # Incremental Gram of the batch mean (MXU, no explicit transpose).
        gram_ref[...] += lax.dot_general(
            s, s, dimension_numbers=(((1,), (1,)), ((), ())),
            preferred_element_type=jnp.float32)                          # [C, C]
        rsum_ref[...] += jnp.sum(s, axis=1, keepdims=True)               # [C, 1]

        @pl.when(n == n_tiles - 1)
        def _():
            srow = rsum_ref[...]                                         # [C, 1]
            cross = lax.dot_general(                                     # s s^T
                srow, srow, dimension_numbers=(((1,), (1,)), ((), ())),
                preferred_element_type=jnp.float32)                      # [C, C]
            cov = gram_ref[...] - cross * inv_n                          # xc xc^T
            c = cov.shape[0]
            row = lax.broadcasted_iota(jnp.int32, (c, c), 0)
            col = lax.broadcasted_iota(jnp.int32, (c, c), 1)
            diag = jnp.where(row == col, cov, 0.0)
            # eps-clamp variance so zero-variance channels don't produce NaNs.
            var_col = jnp.maximum(jnp.sum(diag, axis=1, keepdims=True), eps)
            var_row = jnp.maximum(jnp.sum(diag, axis=0, keepdims=True), eps)
            corr = jnp.clip(cov * lax.rsqrt(var_col) * lax.rsqrt(var_row),
                            -1.0, 1.0)
            # corr is symmetric: row mean == column mean; axis=0 reduction
            # leaves a lane-dense [1, C] output.
            out_ref[...] = jnp.mean(corr, axis=0, keepdims=True)

    return kernel


def mean_similarity(query):
    """query: [B, C, N] -> mean row of corrcoef(query.mean(0)), shape [C]."""
    B, C, N = query.shape
    itemsize = query.dtype.itemsize
    # Per-lane (per-token-column) bytes: double-buffered input + f32 tile temp.
    per_lane = 2 * B * C * itemsize + C * 4
    tn = _choose_tile_n(N, per_lane)
    n_tiles = N // tn
    step_bytes = per_lane * tn + C * C * 4 + C * 4
    cost = pl.CostEstimate(
        flops=int(B * C * N + 2 * C * C * N + 4 * C * C),
        transcendentals=int(2 * C),
        bytes_accessed=int(B * C * N * itemsize + 4 * C))
    out = pl.pallas_call(
        _make_mean_similarity_kernel(B, N, n_tiles),
        out_shape=jax.ShapeDtypeStruct((1, C), jnp.float32),
        grid=(n_tiles,),
        in_specs=[pl.BlockSpec((B, C, tn), lambda n: (0, 0, n))],
        out_specs=pl.BlockSpec((1, C), lambda n: (0, 0)),
        scratch_shapes=[pltpu.VMEM((C, C), jnp.float32),
                        pltpu.VMEM((C, 1), jnp.float32)],
        compiler_params=pltpu.CompilerParams(
            dimension_semantics=("arbitrary",),          # Gram accumulation
            vmem_limit_bytes=_vmem_limit(step_bytes)),
        cost_estimate=cost,
    )(query)
    return out[0]


# ---------------------------------------------------------------------------
# Kernel 2: gather-as-permutation-matmul + group split, one pass, N-tiled.
# ---------------------------------------------------------------------------
def _make_regroup_permute_kernel(group_slices, channels):
    # group_slices: static list of (start, size), size > 0.
    def kernel(idx_ref, q_ref, k_ref, v_ref, *out_refs):
        n_g = len(group_slices)
        # One-hot permutation matrix: P[i, j] = (sorted_indices[i] == j).
        col = lax.broadcasted_iota(jnp.int32, (channels, channels), 1)
        onehot = (idx_ref[...] == col)                        # [C, C] bool
        for t, src_ref in enumerate((q_ref, k_ref, v_ref)):
            src = src_ref[...]                                # [C, tn]
            perm = lax.dot_general(                           # P @ src on the MXU
                onehot.astype(src.dtype), src,
                dimension_numbers=(((1,), (0,)), ((), ())),
                preferred_element_type=jnp.float32)           # exact for permutation
            outs = out_refs[t * n_g:(t + 1) * n_g]
            for g, (start, size) in enumerate(group_slices):
                outs[g][...] = perm[start:start + size, :].astype(outs[g].dtype)

    return kernel


def regroup(query, key, value, groups=(1, 1, 2, 4)):
    """Pallas-backed equivalent of ReGroup.forward."""
    B, C, N = query.shape

    mean_sim = mean_similarity(query)                          # [C]
    # TODO(synk): descending argsort of the similarity stays in plain JAX
    # (a data-dependent global sort has no clean single-kernel Pallas form).
    sorted_indices = jnp.argsort(-mean_sim).astype(jnp.int32)  # [C]
    idx_col = sorted_indices.reshape(C, 1)                     # (C, 1) VMEM input

    total = sum(groups)
    sizes = [int(r / total * C) for r in groups]               # mirrors PyTorch
    # NOTE: like the PyTorch module, sum(sizes) may be < C; trailing channels
    # (lowest similarity) are dropped by construction.
    starts, s = [], 0
    for sz in sizes:
        starts.append(s)
        s += sz
    active = [(st, sz) for st, sz in zip(starts, sizes) if sz > 0]

    q_act, k_act, v_act = [], [], []
    if active:
        itemsize = query.dtype.itemsize
        sum_sz = sum(sz for _, sz in active)
        # Per-lane bytes: dbl-buffered 3 inputs + dbl-buffered group outputs
        # + 3 f32 permuted temporaries.
        per_lane = 2 * 3 * C * itemsize + 2 * 3 * sum_sz * itemsize + 3 * C * 4
        tn = _choose_tile_n(N, per_lane)
        n_tiles = N // tn
        step_bytes = per_lane * tn + C * C * 4 + C * 4

        in_spec = pl.BlockSpec((None, C, tn), lambda b, n: (b, 0, n))
        idx_spec = pl.BlockSpec((C, 1), lambda b, n: (0, 0))
        group_specs = [pl.BlockSpec((None, sz, tn), lambda b, n: (b, 0, n))
                       for (_, sz) in active]
        out_shape = ([jax.ShapeDtypeStruct((B, sz, N), query.dtype) for (_, sz) in active]
                     + [jax.ShapeDtypeStruct((B, sz, N), key.dtype) for (_, sz) in active]
                     + [jax.ShapeDtypeStruct((B, sz, N), value.dtype) for (_, sz) in active])
        cost = pl.CostEstimate(
            flops=int(3 * B * 2 * C * C * N),
            transcendentals=0,
            bytes_accessed=int(B * N * itemsize * (3 * C + 3 * sum_sz) + 4 * C))

        outs = pl.pallas_call(
            _make_regroup_permute_kernel(active, C),
            out_shape=out_shape,
            grid=(B, n_tiles),
            in_specs=[idx_spec, in_spec, in_spec, in_spec],
            out_specs=group_specs * 3,
            compiler_params=pltpu.CompilerParams(
                dimension_semantics=("parallel", "parallel"),  # megacore on v7x
                vmem_limit_bytes=_vmem_limit(step_bytes)),
            cost_estimate=cost,
        )(idx_col, query, key, value)
        n_act = len(active)
        q_act = list(outs[:n_act])
        k_act = list(outs[n_act:2 * n_act])
        v_act = list(outs[2 * n_act:3 * n_act])

    q_groups, k_groups, v_groups = [], [], []
    ai = 0
    for sz in sizes:
        if sz == 0:
            q_groups.append(jnp.zeros((B, 0, N), query.dtype))
            k_groups.append(jnp.zeros((B, 0, N), key.dtype))
            v_groups.append(jnp.zeros((B, 0, N), value.dtype))
        else:
            q_groups.append(q_act[ai])
            k_groups.append(k_act[ai])
            v_groups.append(v_act[ai])
            ai += 1
    return q_groups, k_groups, v_groups


def _reference(query, key, value, groups=(1, 1, 2, 4)):
    """Pure-JAX reference (mirrors the PyTorch forward) for sanity checking."""
    B, C, N = query.shape
    x = jnp.mean(query, axis=0)
    corr = jnp.corrcoef(x)
    mean_sim = jnp.mean(corr, axis=1)
    idx = jnp.argsort(-mean_sim)
    q_s, k_s, v_s = (jnp.take(t, idx, axis=1) for t in (query, key, value))
    total = sum(groups)
    sizes = [int(r / total * C) for r in groups]
    out_q, out_k, out_v, start = [], [], [], 0
    for sz in sizes:
        out_q.append(q_s[:, start:start + sz, :])
        out_k.append(k_s[:, start:start + sz, :])
        out_v.append(v_s[:, start:start + sz, :])
        start += sz
    return out_q, out_k, out_v


if __name__ == "__main__":
    B, C, N = 2, 16, 128
    key0 = jax.random.PRNGKey(0)
    kq, kk, kv = jax.random.split(key0, 3)
    query = jax.random.normal(kq, (B, C, N), dtype=jnp.float32)
    key_t = jax.random.normal(kk, (B, C, N), dtype=jnp.float32)
    value = jax.random.normal(kv, (B, C, N), dtype=jnp.float32)

    q_groups, k_groups, v_groups = regroup(query, key_t, value)
    for t in (*q_groups, *k_groups, *v_groups):
        jax.block_until_ready(t)

    # Sanity check against the pure-JAX reference.
    rq, rk, rv = _reference(query, key_t, value)
    for a, b in zip((*q_groups, *k_groups, *v_groups), (*rq, *rk, *rv)):
        assert a.shape == b.shape, (a.shape, b.shape)
        assert jnp.allclose(a, b, atol=1e-5), "mismatch vs reference"

    print("KERNEL_OK")
</pallas_src>

<mosaic_0001>
module attributes {stable_mosaic.version = 11 : i64} {
  func.func @kernel(%arg0: i32, %arg1: memref<2x16x128xf32, #tpu.memory_space<vmem>>, %arg2: memref<1x16xf32, #tpu.memory_space<vmem>>, %arg3: memref<16x16xf32, #tpu.memory_space<vmem>>, %arg4: memref<16x1xf32, #tpu.memory_space<vmem>>) attributes {dimension_semantics = [#tpu.dimension_semantics<arbitrary>], iteration_bounds = array<i64: 1>, scalar_prefetch = 0 : i64, scratch_operands = 2 : i64, tpu.core_type = #tpu.core_type<tc>, window_params = [{transform_indices = @transform_0, window_bounds = array<i64: 2, 16, 128>}, {pipeline_mode = #tpu.pipeline_mode<synchronous>, transform_indices = @transform_1, window_bounds = array<i64: 1, 16>}]} {
    %c0_i32 = arith.constant 0 : i32
    %0 = arith.cmpi eq, %arg0, %c0_i32 : i32
    %1 = arith.extui %0 : i1 to i32
    %c0_i32_0 = arith.constant 0 : i32
    %2 = arith.cmpi ne, %1, %c0_i32_0 : i32
    scf.if %2 {
      %cst_16 = arith.constant 0.000000e+00 : f32
      %19 = vector.broadcast %cst_16 : f32 to vector<16x16xf32>
      %c0_17 = arith.constant 0 : index
      %c0_18 = arith.constant 0 : index
      %20 = vector.load %arg3[%c0_17, %c0_18] : memref<16x16xf32, #tpu.memory_space<vmem>>, vector<16x16xf32>
      tpu.vector_store %arg3[%c0_17, %c0_18], %19 {strides = array<i32>} : memref<16x16xf32, #tpu.memory_space<vmem>>, vector<16x16xf32>,
      %cst_19 = arith.constant 0.000000e+00 : f32
      %21 = vector.broadcast %cst_19 : f32 to vector<16x1xf32>
      %c0_20 = arith.constant 0 : index
      %c0_21 = arith.constant 0 : index
      %22 = vector.load %arg4[%c0_20, %c0_21] : memref<16x1xf32, #tpu.memory_space<vmem>>, vector<16x1xf32>
      tpu.vector_store %arg4[%c0_20, %c0_21], %21 {strides = array<i32>} : memref<16x1xf32, #tpu.memory_space<vmem>>, vector<16x1xf32>,
    } else {
    }
    %c0 = arith.constant 0 : index
    %c0_1 = arith.constant 0 : index
    %c0_2 = arith.constant 0 : index
    %3 = vector.load %arg1[%c0, %c0_1, %c0_2] : memref<2x16x128xf32, #tpu.memory_space<vmem>>, vector<2x16x128xf32>
    %cst = arith.constant dense<0.000000e+00> : vector<16x128xf32>
    %4 = vector.multi_reduction <add>, %3, %cst [0] : vector<2x16x128xf32> to vector<16x128xf32>
    %cst_3 = arith.constant 5.000000e-01 : f32
    %5 = vector.broadcast %cst_3 : f32 to vector<16x128xf32>
    %6 = arith.mulf %4, %5 : vector<16x128xf32>
    %c0_4 = arith.constant 0 : index
    %c0_5 = arith.constant 0 : index
    %7 = vector.load %arg3[%c0_4, %c0_5] : memref<16x16xf32, #tpu.memory_space<vmem>>, vector<16x16xf32>
    %cst_6 = arith.constant dense<0.000000e+00> : vector<16x16xf32>
    %8 = tpu.matmul %6, %6, %cst_6 {dimension_numbers = #tpu.dot_dimension_numbers<[1], [1], [0], [0], [0, 0, 1, 0], [], []>} : vector<16x128xf32>, vector<16x128xf32>, vector<16x16xf32> -> vector<16x16xf32>
    %9 = arith.addf %7, %8 : vector<16x16xf32>
    %c0_7 = arith.constant 0 : index
    %c0_8 = arith.constant 0 : index
    %10 = vector.load %arg3[%c0_7, %c0_8] : memref<16x16xf32, #tpu.memory_space<vmem>>, vector<16x16xf32>
    tpu.vector_store %arg3[%c0_7, %c0_8], %9 {strides = array<i32>} : memref<16x16xf32, #tpu.memory_space<vmem>>, vector<16x16xf32>,
    %c0_9 = arith.constant 0 : index
    %c0_10 = arith.constant 0 : index
    %11 = vector.load %arg4[%c0_9, %c0_10] : memref<16x1xf32, #tpu.memory_space<vmem>>, vector<16x1xf32>
    %cst_11 = arith.constant dense<0.000000e+00> : vector<16xf32>
    %12 = vector.multi_reduction <add>, %6, %cst_11 [1] : vector<16x128xf32> to vector<16xf32>
    %13 = vector.shape_cast %12 : vector<16xf32> to vector<16x1xf32>
    %14 = arith.addf %11, %13 : vector<16x1xf32>
    %c0_12 = arith.constant 0 : index
    %c0_13 = arith.constant 0 : index
    %15 = vector.load %arg4[%c0_12, %c0_13] : memref<16x1xf32, #tpu.memory_space<vmem>>, vector<16x1xf32>
    tpu.vector_store %arg4[%c0_12, %c0_13], %14 {strides = array<i32>} : memref<16x1xf32, #tpu.memory_space<vmem>>, vector<16x1xf32>,
    %c0_i32_14 = arith.constant 0 : i32
    %16 = arith.cmpi eq, %arg0, %c0_i32_14 : i32
    %17 = arith.extui %16 : i1 to i32
    %c0_i32_15 = arith.constant 0 : i32
    %18 = arith.cmpi ne, %17, %c0_i32_15 : i32
    scf.if %18 {
      %c0_16 = arith.constant 0 : index
      %c0_17 = arith.constant 0 : index
      %19 = vector.load %arg4[%c0_16, %c0_17] : memref<16x1xf32, #tpu.memory_space<vmem>>, vector<16x1xf32>
      %cst_18 = arith.constant dense<0.000000e+00> : vector<16x16xf32>
      %20 = tpu.matmul %19, %19, %cst_18 {dimension_numbers = #tpu.dot_dimension_numbers<[1], [1], [0], [0], [0, 0, 1, 0], [], []>} : vector<16x1xf32>, vector<16x1xf32>, vector<16x16xf32> -> vector<16x16xf32>
      %c0_19 = arith.constant 0 : index
      %c0_20 = arith.constant 0 : index
      %21 = vector.load %arg3[%c0_19, %c0_20] : memref<16x16xf32, #tpu.memory_space<vmem>>, vector<16x16xf32>
      %cst_21 = arith.constant 7.812500e-03 : f32
      %22 = vector.broadcast %cst_21 : f32 to vector<16x16xf32>
      %23 = arith.mulf %20, %22 : vector<16x16xf32>
      %24 = arith.subf %21, %23 : vector<16x16xf32>
      %25 = tpu.iota {dimensions = array<i32: 0>} : vector<16x16xi32>
      %26 = tpu.iota {dimensions = array<i32: 1>} : vector<16x16xi32>
      %27 = arith.cmpi eq, %25, %26 : vector<16x16xi32>
      %cst_22 = arith.constant 0.000000e+00 : f32
      %28 = vector.broadcast %cst_22 : f32 to vector<16x16xf32>
      %29 = arith.select %27, %24, %28 : vector<16x16xi1>, vector<16x16xf32>
      %cst_23 = arith.constant dense<0.000000e+00> : vector<16xf32>
      %30 = vector.multi_reduction <add>, %29, %cst_23 [1] : vector<16x16xf32> to vector<16xf32>
      %31 = vector.shape_cast %30 : vector<16xf32> to vector<16x1xf32>
      %cst_24 = arith.constant 9.99999996E-13 : f32
      %32 = vector.broadcast %cst_24 : f32 to vector<16x1xf32>
      %33 = arith.maximumf %31, %32 : vector<16x1xf32>
      %cst_25 = arith.constant dense<0.000000e+00> : vector<16xf32>
      %34 = vector.multi_reduction <add>, %29, %cst_25 [0] : vector<16x16xf32> to vector<16xf32>
      %35 = vector.shape_cast %34 : vector<16xf32> to vector<1x16xf32>
      %cst_26 = arith.constant 9.99999996E-13 : f32
      %36 = vector.broadcast %cst_26 : f32 to vector<1x16xf32>
      %37 = arith.maximumf %35, %36 : vector<1x16xf32>
      %38 = math.rsqrt %33 : vector<16x1xf32>
      %39 = vector.broadcast %38 : vector<16x1xf32> to vector<16x16xf32>
      %40 = arith.mulf %24, %39 : vector<16x16xf32>
      %41 = math.rsqrt %37 : vector<1x16xf32>
      %42 = vector.broadcast %41 : vector<1x16xf32> to vector<16x16xf32>
      %43 = arith.mulf %40, %42 : vector<16x16xf32>
      %cst_27 = arith.constant -1.000000e+00 : f32
      %cst_28 = arith.constant 1.000000e+00 : f32
      %44 = vector.broadcast %cst_27 : f32 to vector<16x16xf32>
      %45 = arith.maximumf %44, %43 : vector<16x16xf32>
      %46 = vector.broadcast %cst_28 : f32 to vector<16x16xf32>
      %47 = arith.minimumf %46, %45 : vector<16x16xf32>
      %cst_29 = arith.constant dense<0.000000e+00> : vector<16xf32>
      %48 = vector.multi_reduction <add>, %47, %cst_29 [0] : vector<16x16xf32> to vector<16xf32>
      %49 = vector.shape_cast %48 : vector<16xf32> to vector<1x16xf32>
      %cst_30 = arith.constant 1.600000e+01 : f32
      %50 = vector.broadcast %cst_30 : f32 to vector<1x16xf32>
      %51 = arith.divf %49, %50 : vector<1x16xf32>
      %c0_31 = arith.constant 0 : index
      %c0_32 = arith.constant 0 : index
      %52 = vector.load %arg2[%c0_31, %c0_32] : memref<1x16xf32, #tpu.memory_space<vmem>>, vector<1x16xf32>
      tpu.vector_store %arg2[%c0_31, %c0_32], %51 {strides = array<i32>} : memref<1x16xf32, #tpu.memory_space<vmem>>, vector<1x16xf32>,
    } else {
    }
    return
  }
  func.func @transform_0(%arg0: i32) -> (i32, i32, i32) {
    %c0_i32 = arith.constant 0 : i32
    %c0_i32_0 = arith.constant 0 : i32
    %c0_i32_1 = arith.constant 0 : i32
    return %c0_i32, %c0_i32_0, %arg0 : i32, i32, i32
  }
  func.func @transform_1(%arg0: i32) -> (i32, i32) {
    %c0_i32 = arith.constant 0 : i32
    %c0_i32_0 = arith.constant 0 : i32
    %c0_i32_1 = arith.constant 0 : i32
    return %c0_i32, %c0_i32_0 : i32, i32
  }
}

</mosaic_0001>

<llo_original>
// kernel: tpu_custom_call.1
$region0: #{tpu_custom_call.1}
  #allocation0 [shape = 'u32[]', space=smem, size = 0x4, offset = 0x4, fixed_abs, tag = 'smem constant byte address 0x4 - core index']
  #allocation1 [shape = 'u32[144,128]{1,0:T(1,128)}', space=vmem, size = 0x12000, scoped, tag = 'internal scratch']
  #allocation2 [shape = 'f32[16,16]{1,0:T(8,128)}', space=vmem, size = 0x2000, scoped, tag = 'scratch operand']
  #allocation3 [shape = 'f32[16,1]{1,0:T(8,128)}', space=vmem, size = 0x2000, scoped, tag = 'scratch operand']
  %s0 = inlined_call_operand.hbm [shape: f32[2,16,128], index: 0, kind: input, shape index: {}]
  %s1 = inlined_call_operand.hbm [shape: f32[1,16], index: 1, kind: output, shape index: {}]
  %s2 = sld [smem:[#allocation0]]
  $region26: #{tpu_custom_call.1} parent=0
    _
  %s4 = ssub.s32 1, %s2
  %s5 = scalar_select 0, %s4, %s2
  $region1: #{tpu_custom_call.1} parent=0
    #allocation4 [shape = 'u8[16384]{0}', space=vmem, size = 0x4000, scoped, tag = 'input window, operand 0, single buffered']
    #allocation5 [shape = 's32[1]{0}', space=sflag, size = 0x4, scoped, tag = 'scoped memory for tpu_custom_call.1']
    #allocation6 [shape = 's32[1]{0}', space=sflag, size = 0x4, scoped, tag = 'scoped memory for tpu_custom_call.1']
    #allocation7 [shape = 'u8[512]{0}', space=vmem, size = 0x400, scoped, tag = 'output window, operand 0, single buffered']
    %6 = vsyncpa [#allocation5], 0
    %7 = vsyncpa [#allocation6], 0
    // Predicated region
    $region2: #{tpu_custom_call.1} parent=1 // pred_check
      _
    $region3: #{tpu_custom_call.1} parent=1 // pred_check_branch
      %9 = sbr.rel (0) target = $region5
    $region4: #{tpu_custom_call.1} parent=1 // pred_region
      %s11 = ssub.s32 512, 512
      %12 = vsyncadd [#allocation5], %s11
      %s13 = sshll.u32 [#allocation4], 4
      %s14 = int_to_ptr.vmem [resolvable:$true] %s13
      %19 = dma.hbm_to_vmem [thread:$0]  %s0, 512, %s14, [#allocation5], 128, 128, 8
    $region5: #{tpu_custom_call.1} parent=1 // pred_fallthru
      _
    // Predicated region
    $region6: #{tpu_custom_call.1} parent=1 // pred_check
      _
    $region7: #{tpu_custom_call.1} parent=1 // pred_check_branch
      %21 = sbr.rel (0) target = $region9
    $region8: #{tpu_custom_call.1} parent=1 // pred_region
      %22 = dma.done [#allocation5], 512
    $region9: #{tpu_custom_call.1} parent=1 // pred_fallthru
      _
    %p23 = scmp.eq.s32.totalorder 0, 0
    // Predicated region
    $region10: #{tpu_custom_call.1} parent=1 // pred_check
      %p24 = pneg %p23
    $region11: #{tpu_custom_call.1} parent=1 // pred_check_branch
      %26 = sbr.rel (%p24) target = $region13
    $region12: #{tpu_custom_call.1} parent=1 // pred_region
      %vm27 = vcmask 130048
      %28 = vst.msk [vmem:[#allocation2] sm:$0xff] %vm27, 0.0
      %29 = vst.msk [vmem:[#allocation2 + $0x8] sm:$0xff] %vm27, 0.0
      %vm30 = vcmask 7168
      %31 = vst.msk [vmem:[#allocation3] sm:$0xff] %vm30, 0.0
      %32 = vst.msk [vmem:[#allocation3 + $0x8] sm:$0xff] %vm30, 0.0
    $region13: #{tpu_custom_call.1} parent=1 // pred_fallthru
      _
    %v33 = vld [vmem:[#allocation4] sm:$0xff]
    %v34 = vld [vmem:[#allocation4 + $0x8] sm:$0xff]
    %v35 = vld [vmem:[#allocation4 + $0x10] sm:$0xff]
    %v36 = vld [vmem:[#allocation4 + $0x18] sm:$0xff]
    %v37 = vadd.f32 %v33, %v35
    %v38 = vadd.f32 %v34, %v36
    %v39 = vmul.f32 %v37, 0.5
    %v40 = vmul.f32 %v38, 0.5
    %v41 = vld [vmem:[#allocation2] sm:$0xff]
    %v42 = vld [vmem:[#allocation2 + $0x8] sm:$0xff]
    %43 = vmatprep.subr.mxu0 0.0
    %44 = vmatpush1.xpose.msra.mxu0 %v39
    %45 = vmatprep.subr.mxu0 0.0
    %46 = vmatpush1.xpose.msra.mxu0 %v40
    %47 = vmatprep.subr.mxu0 0.0
    %48 = vmatpush1.xpose.msra.mxu0 0.0
    %49 = vmatprep.subr.mxu0 0.0
    %50 = vmatpush1.xpose.msra.mxu0 0.0
    %51 = vmatprep.subr.mxu0 0.0
    %52 = vmatpush1.xpose.msra.mxu0 0.0
    %53 = vmatprep.subr.mxu0 0.0
    %54 = vmatpush1.xpose.msra.mxu0 0.0
    %55 = vmatprep.subr.mxu0 0.0
    %56 = vmatpush1.xpose.msra.mxu0 0.0
    %57 = vmatprep.subr.mxu0 0.0
    %58 = vmatpush1.xpose.msra.mxu0 0.0
    %59 = vmatprep.subr.mxu0 0.0
    %60 = vmatpush1.xpose.msra.mxu0 0.0
    %61 = vmatprep.subr.mxu0 0.0
    %62 = vmatpush1.xpose.msra.mxu0 0.0
    %63 = vmatprep.subr.mxu0 0.0
    %64 = vmatpush1.xpose.msra.mxu0 0.0
    %65 = vmatprep.subr.mxu0 0.0
    %66 = vmatpush1.xpose.msra.mxu0 0.0
    %67 = vmatprep.subr.mxu0 0.0
    %68 = vmatpush1.xpose.msra.mxu0 0.0
    %69 = vmatprep.subr.mxu0 0.0
    %70 = vmatpush1.xpose.msra.mxu0 0.0
    %71 = vmatprep.subr.mxu0 0.0
    %72 = vmatpush1.xpose.msra.mxu0 0.0
    %73 = vmatprep.subr.mxu0 0.0
    %74 = vmatpush1.xpose.msra.mxu0 0.0
    %75 = vmatprep.subr.mxu0 0.0
    %76 = vmatpush1.xpose.msra.mxu0 0.0
    %77 = vmatprep.subr.mxu0 0.0
    %78 = vmatpush1.xpose.msra.mxu0 0.0
    %79 = vmatprep.subr.mxu0 0.0
    %80 = vmatpush1.xpose.msra.mxu0 0.0
    %81 = vmatprep.subr.mxu0 0.0
    %82 = vmatpush1.xpose.msra.mxu0 0.0
    %83 = vmatprep.subr.mxu0 0.0
    %84 = vmatpush1.xpose.msra.mxu0 0.0
    %85 = vmatprep.subr.mxu0 0.0
    %86 = vmatpush1.xpose.msra.mxu0 0.0
    %87 = vmatprep.subr.mxu0 0.0
    %88 = vmatpush1.xpose.msra.mxu0 0.0
    %89 = vmatprep.subr.mxu0 0.0
    %90 = vmatpush1.xpose.msra.mxu0 0.0
    %91 = vmatprep.subr.mxu0 0.0
    %92 = vmatpush1.xpose.msra.mxu0 0.0
    %93 = vmatprep.subr.mxu0 0.0
    %94 = vmatpush1.xpose.msra.mxu0 0.0
    %95 = vmatprep.subr.mxu0 0.0
    %96 = vmatpush1.xpose.msra.mxu0 0.0
    %97 = vmatprep.subr.mxu0 0.0
    %98 = vmatpush1.xpose.msra.mxu0 0.0
    %99 = vmatprep.subr.mxu0 0.0
    %100 = vmatpush1.xpose.msra.mxu0 0.0
    %101 = vmatprep.subr.mxu0 0.0
    %102 = vmatpush1.xpose.msra.mxu0 0.0
    %103 = vmatprep.subr.mxu0 0.0
    %104 = vmatpush1.xpose.msra.mxu0 0.0
    %105 = vmatprep.subr.mxu0 0.0
    %106 = vmatpush1.xpose.msra.mxu0 0.0
    %107 = vmatprep.mubr.f32.mxu0 0.0
    %108 = vmatmul.mubr.f32.gmra.mrb[0].mxu0 %v39
    %v109 = vpop.f32.mrb[0].mxu0
    %v110 = vadd.f32 0.0, %v109
    %v111 = vpop.f32.mrb[0].mxu0
    %112 = vmatprep.mubr.f32.mxu0 0.0
    %113 = vmatmul.mubr.f32.gmra.mrb[0].mxu0 %v40
    %v114 = vpop.f32.mrb[0].mxu0
    %v115 = vadd.f32 0.0, %v114
    %v116 = vpop.f32.mrb[0].mxu0
    %117 = vdwg.mxu0
    %v118 = vadd.f32 %v41, %v110
    %v119 = vadd.f32 %v42, %v115
    %vm120 = vcmask 130048
    %121 = vst.msk [vmem:[#allocation2] sm:$0xff] %vm120, %v118
    %122 = vst.msk [vmem:[#allocation2 + $0x8] sm:$0xff] %vm120, %v119
    %v123 = vld [vmem:[#allocation3] sm:$0xff]
    %v124 = vld [vmem:[#allocation3 + $0x8] sm:$0xff]
    %125 = vadd.xlane.f32.xlu0 %v39
    %v126 = vpop.xlane.xlu0 %125
    %127 = vadd.xlane.f32.xlu0 %v40
    %v128 = vpop.xlane.xlu0 %127
    %v129 = vadd.f32 %v123, %v126
    %v130 = vadd.f32 %v124, %v128
    %vm131 = vcmask 7168
    %132 = vst.msk [vmem:[#allocation3] sm:$0xff] %vm131, %v129
    %133 = vst.msk [vmem:[#allocation3 + $0x8] sm:$0xff] %vm131, %v130
    // Predicated region
    $region14: #{tpu_custom_call.1} parent=1 // pred_check
      %p134 = pneg %p23
    $region15: #{tpu_custom_call.1} parent=1 // pred_check_branch
      %136 = sbr.rel (%p134) target = $region17
    $region16: #{tpu_custom_call.1} parent=1 // pred_region
      %v137 = vld [vmem:[#allocation3] sm:$0xff]
      %v138 = vld [vmem:[#allocation3 + $0x8] sm:$0xff]
      %v140 = vsel %vm131, %v137, 0
      %v143 = vsel %vm131, %v138, 0
      %145 = vmatprep.subr.mxu0 0.0
      %146 = vmatpush1.xpose.msra.mxu0 %v140
      %147 = vmatprep.subr.mxu0 0.0
      %148 = vmatpush1.xpose.msra.mxu0 %v143
      %149 = vmatprep.subr.mxu0 0.0
      %150 = vmatpush1.xpose.msra.mxu0 0.0
      %151 = vmatprep.subr.mxu0 0.0
      %152 = vmatpush1.xpose.msra.mxu0 0.0
      %153 = vmatprep.subr.mxu0 0.0
      %154 = vmatpush1.xpose.msra.mxu0 0.0
      %155 = vmatprep.subr.mxu0 0.0
      %156 = vmatpush1.xpose.msra.mxu0 0.0
      %157 = vmatprep.subr.mxu0 0.0
      %158 = vmatpush1.xpose.msra.mxu0 0.0
      %159 = vmatprep.subr.mxu0 0.0
      %160 = vmatpush1.xpose.msra.mxu0 0.0
      %161 = vmatprep.subr.mxu0 0.0
      %162 = vmatpush1.xpose.msra.mxu0 0.0
      %163 = vmatprep.subr.mxu0 0.0
      %164 = vmatpush1.xpose.msra.mxu0 0.0
      %165 = vmatprep.subr.mxu0 0.0
      %166 = vmatpush1.xpose.msra.mxu0 0.0
      %167 = vmatprep.subr.mxu0 0.0
      %168 = vmatpush1.xpose.msra.mxu0 0.0
      %169 = vmatprep.subr.mxu0 0.0
      %170 = vmatpush1.xpose.msra.mxu0 0.0
      %171 = vmatprep.subr.mxu0 0.0
      %172 = vmatpush1.xpose.msra.mxu0 0.0
      %173 = vmatprep.subr.mxu0 0.0
      %174 = vmatpush1.xpose.msra.mxu0 0.0
      %175 = vmatprep.subr.mxu0 0.0
      %176 = vmatpush1.xpose.msra.mxu0 0.0
      %177 = vmatprep.subr.mxu0 0.0
      %178 = vmatpush1.xpose.msra.mxu0 0.0
      %179 = vmatprep.subr.mxu0 0.0
      %180 = vmatpush1.xpose.msra.mxu0 0.0
      %181 = vmatprep.subr.mxu0 0.0
      %182 = vmatpush1.xpose.msra.mxu0 0.0
      %183 = vmatprep.subr.mxu0 0.0
      %184 = vmatpush1.xpose.msra.mxu0 0.0
      %185 = vmatprep.subr.mxu0 0.0
      %186 = vmatpush1.xpose.msra.mxu0 0.0
      %187 = vmatprep.subr.mxu0 0.0
      %188 = vmatpush1.xpose.msra.mxu0 0.0
      %189 = vmatprep.subr.mxu0 0.0
      %190 = vmatpush1.xpose.msra.mxu0 0.0
      %191 = vmatprep.subr.mxu0 0.0
      %192 = vmatpush1.xpose.msra.mxu0 0.0
      %193 = vmatprep.subr.mxu0 0.0
      %194 = vmatpush1.xpose.msra.mxu0 0.0
      %195 = vmatprep.subr.mxu0 0.0
      %196 = vmatpush1.xpose.msra.mxu0 0.0
      %197 = vmatprep.subr.mxu0 0.0
      %198 = vmatpush1.xpose.msra.mxu0 0.0
      %199 = vmatprep.subr.mxu0 0.0
      %200 = vmatpush1.xpose.msra.mxu0 0.0
      %201 = vmatprep.subr.mxu0 0.0
      %202 = vmatpush1.xpose.msra.mxu0 0.0
      %203 = vmatprep.subr.mxu0 0.0
      %204 = vmatpush1.xpose.msra.mxu0 0.0
      %205 = vmatprep.subr.mxu0 0.0
      %206 = vmatpush1.xpose.msra.mxu0 0.0
      %207 = vmatprep.subr.mxu0 0.0
      %208 = vmatpush1.xpose.msra.mxu0 0.0
      %209 = vmatprep.mubr.f32.mxu0 0.0
      %210 = vmatmul.mubr.f32.gmra.mrb[0].mxu0 %v140
      %v211 = vpop.f32.mrb[0].mxu0
      %v212 = vadd.f32 0.0, %v211
      %v213 = vpop.f32.mrb[0].mxu0
      %214 = vmatprep.mubr.f32.mxu0 0.0
      %215 = vmatmul.mubr.f32.gmra.mrb[0].mxu0 %v143
      %v216 = vpop.f32.mrb[0].mxu0
      %v217 = vadd.f32 0.0, %v216
      %v218 = vpop.f32.mrb[0].mxu0
      %219 = vdwg.mxu0
      %v220 = vld [vmem:[#allocation2] sm:$0xff]
      %v221 = vld [vmem:[#allocation2 + $0x8] sm:$0xff]
      %v222 = vmul.f32 %v212, 0.0078125
      %v223 = vmul.f32 %v217, 0.0078125
      %v224 = vsub.f32 %v220, %v222
      %v225 = vsub.f32 %v221, %v223
      %v226 = vlaneseq
      %v227 = vshrl.u32 %v226, 7
      %v228 = vadd.s32 %v227, 8
      %v229 = vlaneseq
      %v230 = vand.u32 %v229, 127
      %vm231 = vcmp.eq.s32.totalorder %v227, %v230
      %vm232 = vcmp.eq.s32.totalorder %v228, %v230
      %v233 = vsel %vm231, %v224, 0.0
      %v234 = vsel %vm232, %v225, 0.0
      %v235 = vsel %vm120, %v233, 0.0
      %236 = vadd.xlane.f32.xlu0 %v235
      %v237 = vpop.xlane.xlu0 %236
      %v238 = vsel %vm120, %v234, 0.0
      %239 = vadd.xlane.f32.xlu0 %v238
      %v240 = vpop.xlane.xlu0 %239
      %v241 = vmax.f32 %v237, 1e-12
      %v242 = vmax.f32 %v240, 1e-12
      %v243 = vadd.f32 %v235, %v238
      %v244 = vrot.slane %v243, 4
      %v245 = vadd.f32 %v243, %v244
      %v246 = vrot.slane %v245, 2
      %v247 = vadd.f32 %v245, %v246
      %v248 = vrot.slane %v247, 1
      %v249 = vadd.f32 %v247, %v248
      %v250 = vmax.f32 %v249, 1e-12
      %v251 = vrsqrt.pop %v241
      %v252 = vrsqrt.pop %v242
      %v253 = vmul.f32 %v224, %v251
      %v254 = vmul.f32 %v225, %v252
      %v255 = vrsqrt.pop %v250
      %v256 = vmul.f32 %v253, %v255
      %v257 = vmul.f32 %v254, %v255
      %v258 = vmax.f32 %v256, -1.0
      %v259 = vmax.f32 %v257, -1.0
      %v260 = vmin.f32 %v258, 1.0
      %v261 = vmin.f32 %v259, 1.0
      %v262 = vsel %vm120, %v260, 0.0
      %v263 = vsel %vm120, %v261, 0.0
      %v264 = vadd.f32 %v262, %v263
      %v265 = vrot.slane %v264, 4
      %v266 = vadd.f32 %v264, %v265
      %v267 = vrot.slane %v266, 2
      %v268 = vadd.f32 %v266, %v267
      %v269 = vrot.slane %v268, 1
      %v270 = vadd.f32 %v268, %v269
      %v271 = vrcp.pop 16.0
      %v272 = vmul.f32 %v270, %v271
      %vm273 = vcmask 122880
      %274 = vst.msk [vmem:[#allocation7] sm:$0x1] %vm273, %v272
    $region17: #{tpu_custom_call.1} parent=1 // pred_fallthru
      _
    // Predicated region
    $region18: #{tpu_custom_call.1} parent=1 // pred_check
      _
    $region19: #{tpu_custom_call.1} parent=1 // pred_check_branch
      %276 = sbr.rel (0) target = $region21
    $region20: #{tpu_custom_call.1} parent=1 // pred_region
      %s278 = ssub.s32 16, 16
      %279 = vsyncadd [#allocation6], %s278
      %s281 = sshll.u32 [#allocation7], 4
      %s282 = int_to_ptr.vmem [resolvable:$true] %s281
      %284 = dma.vmem_to_hbm [thread:$0]  %s282, 16, %s1, [#allocation6]
    $region21: #{tpu_custom_call.1} parent=1 // pred_fallthru
      _
    // Predicated region
    $region22: #{tpu_custom_call.1} parent=1 // pred_check
      _
    $region23: #{tpu_custom_call.1} parent=1 // pred_check_branch
      %286 = sbr.rel (0) target = $region25
    $region24: #{tpu_custom_call.1} parent=1 // pred_region
      %287 = dma.done [#allocation6], 16
    $region25: #{tpu_custom_call.1} parent=1 // pred_fallthru
      _
    %288 = vsyncpa [#allocation5], 1
    %289 = vsyncpa [#allocation6], 1

</llo_original>
